<compile_context>
chip_gen: v7x
topology: tpu7x:2x2x1
jax: 0.10.0
libtpu: 0.0.40
codegen_flags: <defaults>
</compile_context>

<pallas_src>
import jax
import jax.numpy as jnp
from jax.experimental import pallas as pl
from jax.experimental.pallas import tpu as pltpu


# --------------------------------------------------------------------------- #
# Kernel
# --------------------------------------------------------------------------- #
def _patch_embed_kernel(p_ref, w_ref, pos_ref, o_ref):
    # p_ref  : (1, TM, K) bf16  patch tile for image b
    # w_ref  : (K, E)     bf16  flattened conv weight (constant index -> resident)
    # pos_ref: (TM, E)    f32   pos-embedding rows for this tile (conv bias folded)
    # o_ref  : (1, TM, E)       patch-token output tile
    emb = jnp.dot(p_ref[0], w_ref[...], preferred_element_type=jnp.float32)  # (TM, E)
    o_ref[0, :, :] = (emb + pos_ref[...]).astype(o_ref.dtype)


# --------------------------------------------------------------------------- #
# Generation-aware tiling helpers
# --------------------------------------------------------------------------- #
def _gen_params():
    try:
        kind = jax.devices()[0].device_kind.lower()
    except Exception:
        kind = ""
    if "v7" in kind:
        # v7x: 64 MiB physical VMEM per TC -> keep the scoped limit conservative.
        return {"target_tm": 512, "vmem_limit": 44 * 1024 * 1024}
    if "v5" in kind:
        # v5e: 128 MiB physical VMEM, smaller MXU / lower HBM BW.
        return {"target_tm": 256, "vmem_limit": 64 * 1024 * 1024}
    # v6e (and unknown / newer): 128 MiB physical VMEM.
    return {"target_tm": 512, "vmem_limit": 64 * 1024 * 1024}


def _vmem_bytes(tm, k, e, out_bytes):
    # Per-step footprint with the split output:
    #   patches tile (bf16, double-buffered) + weight (bf16, single live buffer,
    #   constant index_map) + pos tile (f32, double-buffered) + output tile.
    return (2 * tm * k * 2
            + k * e * 2
            + 2 * tm * e * 4
            + 2 * tm * e * out_bytes)


def _round_up(v, m):
    return ((v + m - 1) // m) * m


def _choose_tm(n, k, e, target, budget_bytes, out_bytes):
    tm = min(_round_up(target, 8), _round_up(n, 8))
    while tm > 8 and _vmem_bytes(tm, k, e, out_bytes) > budget_bytes:
        tm -= 8
    return max(tm, 8)


# --------------------------------------------------------------------------- #
# Wrapper
# --------------------------------------------------------------------------- #
def patch_embedding(x, conv_w, conv_b, cls_tok, pos_emb, patch_size,
                    out_dtype=jnp.float32):
    """x: (B, C, H, W) float32.  Returns (B, num_patches + 1, embed_dim)."""
    B, C, H, W = x.shape
    P = patch_size
    assert H % P == 0 and W % P == 0, "Image size must be divisible by patch size"
    Hn, Wn = H // P, W // P
    N = Hn * Wn
    E = conv_w.shape[0]
    K = C * P * P

    # ---- parameter prep (tiny: O(K*E + N*E)) --------------------------------
    # Flatten order (C, P, P) matches PyTorch Conv2d weight (E, C, P, P).
    w_flat = conv_w.reshape(E, K).T.astype(jnp.bfloat16)               # (K, E)
    pos = pos_emb.reshape(N + 1, E).astype(jnp.float32)
    pos_patch = pos[1:] + conv_b.reshape(1, E).astype(jnp.float32)     # bias folded
    cls_row = cls_tok.reshape(1, 1, E).astype(jnp.float32) + pos[0].reshape(1, 1, E)

    # ---- patch extraction (pure data movement, emitted directly in bf16) ----
    # TODO(synk): fuse im2col into the kernel (grid over (B, Hn) with a
    # (1, C, P, W) x-block and an in-kernel reshuffle) to remove this extra
    # HBM pass; kept in the wrapper for lowering robustness, with the bf16
    # cast fused to halve the extra traffic.
    patches = x.reshape(B, C, Hn, P, Wn, P)
    patches = patches.transpose(0, 2, 4, 1, 3, 5).reshape(B, N, K)
    patches = patches.astype(jnp.bfloat16)

    # ---- tiling --------------------------------------------------------------
    gen = _gen_params()
    out_bytes = jnp.dtype(out_dtype).itemsize
    tm = _choose_tm(N, K, E, gen["target_tm"],
                    budget_bytes=(gen["vmem_limit"] * 3) // 4,
                    out_bytes=out_bytes)
    n_pad = _round_up(N, tm)
    n_tiles = n_pad // tm

    if n_pad != N:
        # Zero-pad patch rows (and pos rows) so TM stays MXU-aligned for any N;
        # padded rows are discarded after the call.
        patches = jnp.pad(patches, ((0, 0), (0, n_pad - N), (0, 0)))
        pos_patch = jnp.pad(pos_patch, ((0, n_pad - N), (0, 0)))

    # TODO(synk): if DMA is still exposed on large shapes, add
    # pipeline_mode=pl.Buffered(3) to the patches BlockSpec; for toy configs
    # (E < 128) padding E to 128 would make stores lane-dense.
    patch_tokens = pl.pallas_call(
        _patch_embed_kernel,
        out_shape=jax.ShapeDtypeStruct((B, n_pad, E), out_dtype),
        grid_spec=pltpu.PrefetchScalarGridSpec(
            num_scalar_prefetch=0,
            # n outer, b inner: weight (constant index) and the pos tile stay
            # resident in VMEM across the whole batch loop.
            grid=(n_tiles, B),
            in_specs=[
                pl.BlockSpec((1, tm, K), lambda n, b: (b, n, 0)),   # patches
                pl.BlockSpec((K, E), lambda n, b: (0, 0)),          # weight
                pl.BlockSpec((tm, E), lambda n, b: (n, 0)),         # pos (+bias)
            ],
            out_specs=pl.BlockSpec((1, tm, E), lambda n, b: (b, n, 0)),
        ),
        compiler_params=pltpu.CompilerParams(
            # Every grid step writes a distinct output block -> both axes are
            # independent; lets v7x's two TensorCores split work even at B=1.
            dimension_semantics=("parallel", "parallel"),
            vmem_limit_bytes=gen["vmem_limit"],
        ),
    )(patches, w_flat, pos_patch)

    if n_pad != N:
        patch_tokens = patch_tokens[:, :N, :]

    cls_rows = jnp.broadcast_to(cls_row.astype(out_dtype), (B, 1, E))
    # TODO(synk): dropout is identity here (eval mode); no RNG masking applied.
    return jnp.concatenate([cls_rows, patch_tokens], axis=1)


# --------------------------------------------------------------------------- #
# Pure-JAX reference
# --------------------------------------------------------------------------- #
def _reference(x, conv_w, conv_b, cls_tok, pos_emb, patch_size):
    B, C, H, W = x.shape
    P = patch_size
    Hn, Wn = H // P, W // P
    N = Hn * Wn
    E = conv_w.shape[0]
    patches = x.reshape(B, C, Hn, P, Wn, P).transpose(0, 2, 4, 1, 3, 5)
    patches = patches.reshape(B, N, C * P * P)
    emb = jnp.einsum("bnk,ek->bne", patches, conv_w.reshape(E, -1)) + conv_b
    cls = jnp.broadcast_to(cls_tok.reshape(1, 1, E), (B, 1, E))
    tokens = jnp.concatenate([cls, emb], axis=1)
    return tokens + pos_emb.reshape(1, N + 1, E)


if __name__ == "__main__":
    # config: image_size=16, patch_size=4, image_channel=4, embed_dim=32
    B, C, IMG, P, E = 2, 4, 16, 4, 32
    N = (IMG // P) ** 2

    key = jax.random.PRNGKey(0)
    kx, kw, kb, kc, kp = jax.random.split(key, 5)

    x = jax.random.normal(kx, (B, C, IMG, IMG), dtype=jnp.float32)
    conv_w = jax.random.normal(kw, (E, C, P, P), dtype=jnp.float32) * 0.02
    conv_b = jax.random.normal(kb, (E,), dtype=jnp.float32) * 0.02
    cls_tok = jax.random.uniform(kc, (1, 1, E), dtype=jnp.float32)
    pos_emb = jax.random.uniform(kp, (1, N + 1, E), dtype=jnp.float32)

    out = patch_embedding(x, conv_w, conv_b, cls_tok, pos_emb, P)
    out = jax.block_until_ready(out)
    assert out.shape == (B, N + 1, E)

    ref = _reference(x, conv_w, conv_b, cls_tok, pos_emb, P)
    max_err = float(jnp.max(jnp.abs(out - ref)))
    # bf16 matmul operands with f32 accumulation -> relaxed tolerance.
    assert max_err < 2e-2, f"max abs err {max_err}"
    print("KERNEL_OK")
</pallas_src>

<mosaic_0001>
module attributes {stable_mosaic.version = 11 : i64} {
  func.func @_patch_embed_kernel(%arg0: i32, %arg1: i32, %arg2: memref<1x16x64xbf16, #tpu.memory_space<vmem>>, %arg3: memref<64x32xbf16, #tpu.memory_space<vmem>>, %arg4: memref<16x32xf32, #tpu.memory_space<vmem>>, %arg5: memref<1x16x32xf32, #tpu.memory_space<vmem>>) attributes {dimension_semantics = [#tpu.dimension_semantics<parallel>, #tpu.dimension_semantics<parallel>], iteration_bounds = array<i64: 1, 2>, scalar_prefetch = 0 : i64, scratch_operands = 0 : i64, tpu.core_type = #tpu.core_type<tc>, window_params = [{transform_indices = @transform_0, window_bounds = array<i64: 1, 16, 64>}, {pipeline_mode = #tpu.pipeline_mode<synchronous>, transform_indices = @transform_1, window_bounds = array<i64: 64, 32>}, {transform_indices = @transform_2, window_bounds = array<i64: 16, 32>}, {transform_indices = @transform_3, window_bounds = array<i64: 1, 16, 32>}]} {
    %c0 = arith.constant 0 : index
    %c0_0 = arith.constant 0 : index
    %c0_1 = arith.constant 0 : index
    %0 = vector.load %arg2[%c0, %c0_0, %c0_1] : memref<1x16x64xbf16, #tpu.memory_space<vmem>>, vector<1x16x64xbf16>
    %1 = vector.shape_cast %0 : vector<1x16x64xbf16> to vector<16x64xbf16>
    %c0_2 = arith.constant 0 : index
    %c0_3 = arith.constant 0 : index
    %2 = vector.load %arg3[%c0_2, %c0_3] : memref<64x32xbf16, #tpu.memory_space<vmem>>, vector<64x32xbf16>
    %cst = arith.constant dense<0.000000e+00> : vector<16x32xf32>
    %3 = tpu.matmul %1, %2, %cst {dimension_numbers = #tpu.dot_dimension_numbers<[1], [0], [0], [1], [0, 0, 1, 1], [], []>} : vector<16x64xbf16>, vector<64x32xbf16>, vector<16x32xf32> -> vector<16x32xf32>
    %c0_4 = arith.constant 0 : index
    %c0_5 = arith.constant 0 : index
    %4 = vector.load %arg4[%c0_4, %c0_5] : memref<16x32xf32, #tpu.memory_space<vmem>>, vector<16x32xf32>
    %5 = arith.addf %3, %4 : vector<16x32xf32>
    %c0_6 = arith.constant 0 : index
    %c0_7 = arith.constant 0 : index
    %c0_8 = arith.constant 0 : index
    %6 = vector.load %arg5[%c0_6, %c0_7, %c0_8] : memref<1x16x32xf32, #tpu.memory_space<vmem>>, vector<1x16x32xf32>
    %7 = vector.shape_cast %6 : vector<1x16x32xf32> to vector<16x32xf32>
    %8 = vector.shape_cast %5 : vector<16x32xf32> to vector<1x16x32xf32>
    tpu.vector_store %arg5[%c0_6, %c0_7, %c0_8], %8 {strides = array<i32>} : memref<1x16x32xf32, #tpu.memory_space<vmem>>, vector<1x16x32xf32>,
    return
  }
  func.func @transform_0(%arg0: i32, %arg1: i32) -> (i32, i32, i32) {
    %c0_i32 = arith.constant 0 : i32
    %c0_i32_0 = arith.constant 0 : i32
    return %arg1, %arg0, %c0_i32 : i32, i32, i32
  }
  func.func @transform_1(%arg0: i32, %arg1: i32) -> (i32, i32) {
    %c0_i32 = arith.constant 0 : i32
    %c0_i32_0 = arith.constant 0 : i32
    %c0_i32_1 = arith.constant 0 : i32
    return %c0_i32, %c0_i32_0 : i32, i32
  }
  func.func @transform_2(%arg0: i32, %arg1: i32) -> (i32, i32) {
    %c0_i32 = arith.constant 0 : i32
    %c0_i32_0 = arith.constant 0 : i32
    return %arg0, %c0_i32 : i32, i32
  }
  func.func @transform_3(%arg0: i32, %arg1: i32) -> (i32, i32, i32) {
    %c0_i32 = arith.constant 0 : i32
    %c0_i32_0 = arith.constant 0 : i32
    return %arg1, %arg0, %c0_i32 : i32, i32, i32
  }
}

</mosaic_0001>

<llo_original>
// kernel: tpu_custom_call.1
$region0: #{tpu_custom_call.1}
  #allocation0 [shape = 'u32[]', space=smem, size = 0x4, offset = 0x4, fixed_abs, tag = 'smem constant byte address 0x4 - core index']
  #allocation1 [shape = 'u32[144,128]{1,0:T(1,128)}', space=vmem, size = 0x12000, scoped, tag = 'internal scratch']
  %s0 = inlined_call_operand.hbm [shape: bf16[2,16,64], index: 0, kind: input, shape index: {}]
  %s1 = inlined_call_operand.hbm [shape: bf16[64,32], index: 1, kind: input, shape index: {}]
  %s2 = inlined_call_operand.hbm [shape: f32[16,32], index: 2, kind: input, shape index: {}]
  %s3 = inlined_call_operand.hbm [shape: f32[2,16,32], index: 3, kind: output, shape index: {}]
  %s4 = sld [smem:[#allocation0]]
  $region57: #{tpu_custom_call.1} parent=0
    _
  %s6 = ssub.s32 1, %s4
  %s7 = scalar_select 0, %s6, %s4
  $region1: #{tpu_custom_call.1} parent=0
    #allocation2 [shape = 'u8[8192]{0}', space=vmem, size = 0x2000, scoped, tag = 'input window, operand 0']
    #allocation3 [shape = 's32[2]{0}', space=sflag, size = 0x8, scoped, tag = 'scoped memory for tpu_custom_call.1']
    #allocation4 [shape = 's32[2]{0}', space=sflag, size = 0x8, scoped, tag = 'scoped memory for tpu_custom_call.1']
    #allocation5 [shape = 'u8[16384]{0}', space=vmem, size = 0x4000, scoped, tag = 'input window, operand 1, single buffered']
    #allocation6 [shape = 's32[1]{0}', space=sflag, size = 0x4, scoped, tag = 'scoped memory for tpu_custom_call.1']
    #allocation7 [shape = 'u8[8192]{0}', space=vmem, size = 0x2000, scoped, tag = 'input window, operand 2, single buffered']
    #allocation8 [shape = 'u8[16384]{0}', space=vmem, size = 0x4000, scoped, tag = 'output window, operand 0']
    %8 = vsyncpa [#allocation3], 0
    %s9 = scalar_lea.sflag [#allocation3], 1
    %10 = vsyncpa %s9, 0
    %11 = vsyncpa [#allocation6], 0
    %12 = vsyncpa [#allocation4], 0
    %s13 = scalar_lea.sflag [#allocation4], 1
    %14 = vsyncpa %s13, 0
    loop: start=0, step=1, limit=4
    $region2: #{tpu_custom_call.1} parent=1 // loop_pre_header
      _
    $region3: #{tpu_custom_call.1} parent=1 // loop_header
      %s16 = sphi 0, %s20
      %p17 = scmp.ge.s32.totalorder %s16, 4
      %s23 = sphi 0, %s35
      %s24 = sphi 0, %s31
      %s25 = sphi 0, %s23
      %s26 = sphi 0, %s24
      %s27 = sphi 0, %s25
      %s28 = sphi 0, %s26
      %s40 = sphi 0, %s42
      %s43 = sphi 0, %s40
      %s44 = sphi 0, %s43
      %s60 = sphi 0, %s44
      %s64 = sphi 0, %s64
      %s66 = sphi 0, %s64
      %s67 = sphi 0, %s66
      %s81 = sphi 0, %s67
      %s87 = sphi 0, %s89
      %s90 = sphi 0, %s87
      %s91 = sphi 0, %s90
      %s107 = sphi 0, %s91
      %s115 = sphi 0, %s117
      %s118 = sphi 0, %s115
      %s119 = sphi 0, %s118
      %s135 = sphi 0, %s119
    $region4: #{tpu_custom_call.1} parent=1 // loop_header_branch
      %19 = sbr.rel (%p17) target = $region8
    $region5: #{tpu_custom_call.1} parent=1 // loop_body
      %s21 = ssub.s32 %s16, 1
      %s22 = ssub.s32 %s16, 2
      %s29 = sadd.s32 1, %s24
      %p30 = scmp.ge.s32.totalorder %s29, 2
      %s31 = scalar_select %p30, 0, %s29
      %s32 = sadd.s32 1, %s23
      %s33 = scalar_select %p30, %s32, %s23
      %p34 = scmp.ge.s32.totalorder %s33, 1
      %s35 = scalar_select %p34, 0, %s33
      %s36 = ssub.s32 %s24, %s31
      %s37 = ssub.s32 %s23, %s35
      %s38 = sor.u32 %s36, %s37
      %p39 = scmp.eq.s32.totalorder %s38, 0
      %s41 = sadd.s32 %s40, 1
      %s42 = scalar_select %p39, %s40, %s41
      %p45 = pneg %p39
      %p46 = scmp.eq.s32.totalorder %s16, 1
      %p47 = por %p45, %p46
      %p48 = scmp.ne.s32.totalorder %s40, %s43
      %p49 = scmp.eq.s32.totalorder %s16, 0
      %p50 = por %p48, %p49
      %p51 = scmp.ne.s32.totalorder %s40, %s43
      %p52 = scmp.eq.s32.totalorder %s21, 1
      %p53 = por %p51, %p52
      %p54 = scmp.ne.s32.totalorder %s43, %s44
      %p55 = scmp.eq.s32.totalorder %s21, 0
      %p56 = por %p54, %p55
      %p57 = scmp.ne.s32.totalorder %s43, %s44
      %p58 = scmp.eq.s32.totalorder %s22, 1
      %p59 = por %p57, %p58
      %p61 = scmp.ne.s32.totalorder %s44, %s60
      %p62 = scmp.eq.s32.totalorder %s22, 0
      %p63 = por %p61, %p62
      %s65 = sadd.s32 %s64, 1
      %p68 = scmp.eq.s32.totalorder %s16, 1
      %p69 = scmp.ne.s32.totalorder %s64, %s66
      %p70 = scmp.eq.s32.totalorder %s16, 0
      %p71 = por %p69, %p70
      %p72 = scmp.ne.s32.totalorder %s64, %s66
      %p73 = scmp.eq.s32.totalorder %s21, 1
      %p74 = por %p72, %p73
      %p75 = scmp.ne.s32.totalorder %s66, %s67
      %p76 = scmp.eq.s32.totalorder %s21, 0
      %p77 = por %p75, %p76
      %p78 = scmp.ne.s32.totalorder %s66, %s67
      %p79 = scmp.eq.s32.totalorder %s22, 1
      %p80 = por %p78, %p79
      %p82 = scmp.ne.s32.totalorder %s67, %s81
      %p83 = scmp.eq.s32.totalorder %s22, 0
      %p84 = por %p82, %p83
      %s85 = ssub.s32 %s23, %s35
      %p86 = scmp.eq.s32.totalorder %s85, 0
      %s88 = sadd.s32 %s87, 1
      %s89 = scalar_select %p86, %s87, %s88
      %p92 = pneg %p86
      %p93 = scmp.eq.s32.totalorder %s16, 1
      %p94 = por %p92, %p93
      %p95 = scmp.ne.s32.totalorder %s87, %s90
      %p96 = scmp.eq.s32.totalorder %s16, 0
      %p97 = por %p95, %p96
      %p98 = scmp.ne.s32.totalorder %s87, %s90
      %p99 = scmp.eq.s32.totalorder %s21, 1
      %p100 = por %p98, %p99
      %p101 = scmp.ne.s32.totalorder %s90, %s91
      %p102 = scmp.eq.s32.totalorder %s21, 0
      %p103 = por %p101, %p102
      %p104 = scmp.ne.s32.totalorder %s90, %s91
      %p105 = scmp.eq.s32.totalorder %s22, 1
      %p106 = por %p104, %p105
      %p108 = scmp.ne.s32.totalorder %s91, %s107
      %p109 = scmp.eq.s32.totalorder %s22, 0
      %p110 = por %p108, %p109
      %s111 = ssub.s32 %s24, %s31
      %s112 = ssub.s32 %s23, %s35
      %s113 = sor.u32 %s111, %s112
      %p114 = scmp.eq.s32.totalorder %s113, 0
      %s116 = sadd.s32 %s115, 1
      %s117 = scalar_select %p114, %s115, %s116
      %p120 = pneg %p114
      %p121 = scmp.eq.s32.totalorder %s16, 1
      %p122 = por %p120, %p121
      %p123 = scmp.ne.s32.totalorder %s115, %s118
      %p124 = scmp.eq.s32.totalorder %s16, 0
      %p125 = por %p123, %p124
      %p126 = scmp.ne.s32.totalorder %s115, %s118
      %p127 = scmp.eq.s32.totalorder %s21, 1
      %p128 = por %p126, %p127
      %p129 = scmp.ne.s32.totalorder %s118, %s119
      %p130 = scmp.eq.s32.totalorder %s21, 0
      %p131 = por %p129, %p130
      %p132 = scmp.ne.s32.totalorder %s118, %s119
      %p133 = scmp.eq.s32.totalorder %s22, 1
      %p134 = por %p132, %p133
      %p136 = scmp.ne.s32.totalorder %s119, %s135
      %p137 = scmp.eq.s32.totalorder %s22, 0
      %p138 = por %p136, %p137
      %p139 = scmp.le.s32.totalorder 1, %s16
      %p140 = scmp.lt.s32.totalorder %s16, 3
      %p141 = pnand %p139, %p140
      %p142 = pneg %p141
      // Predicated region
      $region9: #{tpu_custom_call.1} parent=5 // pred_check
        _
      $region10: #{tpu_custom_call.1} parent=5 // pred_check_branch
        %144 = sbr.rel (%p141) target = $region12
      $region11: #{tpu_custom_call.1} parent=5 // pred_region
        %s145 = ssub.s32 %s16, 1
        // Predicated region
        $region13: #{tpu_custom_call.1} parent=11 // pred_check
          %p146 = pneg %p77
        $region14: #{tpu_custom_call.1} parent=11 // pred_check_branch
          %148 = sbr.rel (%p146) target = $region16
        $region15: #{tpu_custom_call.1} parent=11 // pred_region
          %s150 = ssub.s32 512, 512
          %151 = vsyncadd [#allocation6], %s150
          %s152 = sshll.u32 [#allocation5], 4
          %s153 = int_to_ptr.vmem [resolvable:$true] %s152
          %158 = dma.hbm_to_vmem [thread:$0]  %s1, 512, %s153, [#allocation6], 64, 64, 4
        $region16: #{tpu_custom_call.1} parent=11 // pred_fallthru
          _
        // Predicated region
        $region17: #{tpu_custom_call.1} parent=11 // pred_check
          %p159 = pneg %p103
        $region18: #{tpu_custom_call.1} parent=11 // pred_check_branch
          %161 = sbr.rel (%p159) target = $region20
        $region19: #{tpu_custom_call.1} parent=11 // pred_region
          %s162 = smul.u32 2, %s25
          %s164 = ssub.s32 256, 256
          %165 = vsyncadd [#allocation6], %s164
          %s166 = smul.addr %s162, 128
          %s167 = scalar_lea.hbm %s2, %s166
          %s168 = sshll.u32 [#allocation7], 4
          %s169 = int_to_ptr.vmem [resolvable:$true] %s168
          %174 = dma.hbm_to_vmem [thread:$0]  %s167, 256, %s169, [#allocation6], 128, 128, 8
        $region20: #{tpu_custom_call.1} parent=11 // pred_fallthru
          _
      $region12: #{tpu_custom_call.1} parent=5 // pred_fallthru
        _
      %p175 = scmp.lt.s32.totalorder %s16, 2
      // Predicated region
      $region21: #{tpu_custom_call.1} parent=5 // pred_check
        %p176 = pneg %p175
      $region22: #{tpu_custom_call.1} parent=5 // pred_check_branch
        %178 = sbr.rel (%p176) target = $region24
      $region23: #{tpu_custom_call.1} parent=5 // pred_region
        // Predicated region
        $region25: #{tpu_custom_call.1} parent=23 // pred_check
          %p179 = pneg %p50
        $region26: #{tpu_custom_call.1} parent=23 // pred_check_branch
          %181 = sbr.rel (%p179) target = $region28
        $region27: #{tpu_custom_call.1} parent=23 // pred_region
          %s182 = sand.u32 %s40, 1
          %s183 = scalar_lea.sflag [#allocation3], %s182
          %s184 = sand.u32 %s40, 1
          %s185 = smul.addr %s184, 8
          %s186 = scalar_lea.vmem [#allocation2], %s185
          %s187 = smul.u32 2, %s23
          %s189 = ssub.s32 128, 128
          %190 = vsyncadd %s183, %s189
          %s191 = smul.addr %s24, 2
          %s192 = sadd.s32 %s187, %s191
          %s193 = smul.addr %s192, 64
          %s194 = scalar_lea.hbm %s0, %s193
          %s195 = sshll.u32 %s186, 4
          %s196 = int_to_ptr.vmem [resolvable:$true] %s195
          %201 = dma.hbm_to_vmem [thread:$0]  %s194, 128, %s196, %s183, 64, 64, 4
        $region28: #{tpu_custom_call.1} parent=23 // pred_fallthru
          _
      $region24: #{tpu_custom_call.1} parent=5 // pred_fallthru
        _
      %p202 = scmp.le.s32.totalorder 1, %s16
      %p203 = scmp.lt.s32.totalorder %s16, 3
      %p204 = pnand %p202, %p203
      %p205 = pneg %p204
      // Predicated region
      $region29: #{tpu_custom_call.1} parent=5 // pred_check
        _
      $region30: #{tpu_custom_call.1} parent=5 // pred_check_branch
        %207 = sbr.rel (%p204) target = $region32
      $region31: #{tpu_custom_call.1} parent=5 // pred_region
        %s208 = ssub.s32 %s16, 1
        %s209 = sand.u32 %s43, 1
        %s210 = scalar_lea.sflag [#allocation3], %s209
        %s211 = sand.u32 %s43, 1
        %s212 = smul.addr %s211, 8
        %s213 = scalar_lea.vmem [#allocation2], %s212
        // Predicated region
        $region33: #{tpu_custom_call.1} parent=31 // pred_check
          %p214 = pneg %p56
        $region34: #{tpu_custom_call.1} parent=31 // pred_check_branch
          %216 = sbr.rel (%p214) target = $region36
        $region35: #{tpu_custom_call.1} parent=31 // pred_region
          %217 = dma.done %s210, 128
        $region36: #{tpu_custom_call.1} parent=31 // pred_fallthru
          _
        // Predicated region
        $region37: #{tpu_custom_call.1} parent=31 // pred_check
          %p218 = pneg %p77
        $region38: #{tpu_custom_call.1} parent=31 // pred_check_branch
          %220 = sbr.rel (%p218) target = $region40
        $region39: #{tpu_custom_call.1} parent=31 // pred_region
          %221 = dma.done [#allocation6], 512
        $region40: #{tpu_custom_call.1} parent=31 // pred_fallthru
          _
        // Predicated region
        $region41: #{tpu_custom_call.1} parent=31 // pred_check
          %p222 = pneg %p103
        $region42: #{tpu_custom_call.1} parent=31 // pred_check_branch
          %224 = sbr.rel (%p222) target = $region44
        $region43: #{tpu_custom_call.1} parent=31 // pred_region
          %225 = dma.done [#allocation6], 256
        $region44: #{tpu_custom_call.1} parent=31 // pred_fallthru
          _
        %s226 = sand.u32 %s43, 1
        %s227 = scalar_lea.sflag [#allocation3], %s226
        %s228 = sand.u32 %s43, 1
        %s229 = smul.addr %s228, 8
        %s230 = scalar_lea.vmem [#allocation2], %s229
        %p231 = pneg %p56
        %p232 = pneg %p53
        %p233 = pneg %p77
        %p234 = pneg %p74
        %p235 = pneg %p103
        %p236 = pneg %p100
        %p237 = pneg %p131
        %p238 = pneg %p128
        %s239 = sand.u32 %s118, 1
        %s240 = scalar_lea.sflag [#allocation4], %s239
        %s241 = sand.u32 %s118, 1
        %s242 = smul.addr %s241, 16
        %s243 = scalar_lea.vmem [#allocation8], %s242
        %s244 = smul.u32 2, %s25
        %s245 = smul.u32 2, %s25
        %s246 = smul.u32 2, %s25
        %v248 = vld [vmem:[%s213] sm:$0xf]
        %v249 = vld [vmem:[%s213 + $0x4] sm:$0xf]
        %v250 = vld [vmem:[#allocation5] sm:$0xf]
        %v251 = vld [vmem:[#allocation5 + $0x4] sm:$0xf]
        %v252 = vld [vmem:[#allocation5 + $0x8] sm:$0xf]
        %v253 = vld [vmem:[#allocation5 + $0xc] sm:$0xf]
        %v254 = vld [vmem:[#allocation5 + $0x10] sm:$0xf]
        %v255 = vld [vmem:[#allocation5 + $0x14] sm:$0xf]
        %v256 = vld [vmem:[#allocation5 + $0x18] sm:$0xf]
        %v257 = vld [vmem:[#allocation5 + $0x1c] sm:$0xf]
        %v258 = vld [vmem:[#allocation7] sm:$0xff]
        %v259 = vld [vmem:[#allocation7 + $0x8] sm:$0xff]
        %v262 = vunpack.c.l.b16 %v248
        %v263 = vunpack.c.l.b16 %v249
        %v264 = vpack.c.b16 %v263, %v262
        %v273 = vunpack.c.l.b16 %v250
        %v274 = vunpack.c.l.b16 %v251
        %v275 = vunpack.c.l.b16 %v252
        %v276 = vunpack.c.l.b16 %v253
        %v277 = vunpack.c.l.b16 %v254
        %v278 = vunpack.c.l.b16 %v255
        %v279 = vunpack.c.l.b16 %v256
        %v280 = vunpack.c.l.b16 %v257
        %v281 = vpack.c.b16 %v274, %v273
        %v282 = vpack.c.b16 %v276, %v275
        %v283 = vpack.c.b16 %v278, %v277
        %v284 = vpack.c.b16 %v280, %v279
        %vm289 = vcmask 523264
        %v291 = vsel %vm289, %v264, 0
        %293 = vmatprep.subr.bf16.mxu0 0
        %294 = vmatpush1.bf16.msra.mxu0 %v281
        %295 = vmatprep.subr.bf16.mxu0 0
        %296 = vmatpush1.bf16.msra.mxu0 %v282
        %297 = vmatprep.subr.bf16.mxu0 0
        %298 = vmatpush1.bf16.msra.mxu0 %v283
        %299 = vmatprep.subr.bf16.mxu0 0
        %300 = vmatpush1.bf16.msra.mxu0 %v284
        %301 = vmatprep.subr.bf16.mxu0 0
        %302 = vmatpush1.bf16.msra.mxu0 0
        %303 = vmatprep.subr.bf16.mxu0 0
        %304 = vmatpush1.bf16.msra.mxu0 0
        %305 = vmatprep.subr.bf16.mxu0 0
        %306 = vmatpush1.bf16.msra.mxu0 0
        %307 = vmatprep.subr.bf16.mxu0 0
        %308 = vmatpush1.bf16.msra.mxu0 0
        %309 = vmatprep.subr.bf16.mxu0 0
        %310 = vmatpush1.bf16.msra.mxu0 0
        %311 = vmatprep.subr.bf16.mxu0 0
        %312 = vmatpush1.bf16.msra.mxu0 0
        %313 = vmatprep.subr.bf16.mxu0 0
        %314 = vmatpush1.bf16.msra.mxu0 0
        %315 = vmatprep.subr.bf16.mxu0 0
        %316 = vmatpush1.bf16.msra.mxu0 0
        %317 = vmatprep.subr.bf16.mxu0 0
        %318 = vmatpush1.bf16.msra.mxu0 0
        %319 = vmatprep.subr.bf16.mxu0 0
        %320 = vmatpush1.bf16.msra.mxu0 0
        %321 = vmatprep.subr.bf16.mxu0 0
        %322 = vmatpush1.bf16.msra.mxu0 0
        %323 = vmatprep.subr.bf16.mxu0 0
        %324 = vmatpush1.bf16.msra.mxu0 0
        %325 = vmatprep.mubr.bf16.mxu0 0
        %326 = vmatmul.mubr.bf16.gmra.mrb[0].mxu0 %v291
        %v327 = vpop.f32.mrb[0].mxu0
        %v328 = vadd.f32 %v258, %v327
        %v329 = vpop.f32.mrb[0].mxu0
        %v330 = vpop.f32.mrb[0].mxu0
        %v331 = vadd.f32 %v259, %v330
        %v332 = vpop.f32.mrb[0].mxu0
        %333 = vdwg.mxu0
        %vm334 = vcmask 261120
        %335 = vst.msk [vmem:[%s243] sm:$0xff] %vm334, %v328
        %336 = vst.msk [vmem:[%s243 + $0x8] sm:$0xff] %vm334, %v331
        %s337 = sand.u32 %s118, 1
        %s338 = scalar_lea.sflag [#allocation4], %s337
        %s339 = sand.u32 %s118, 1
        %s340 = smul.addr %s339, 16
        %s341 = scalar_lea.vmem [#allocation8], %s340
        // Predicated region
        $region45: #{tpu_custom_call.1} parent=31 // pred_check
          %p342 = pneg %p128
        $region46: #{tpu_custom_call.1} parent=31 // pred_check_branch
          %344 = sbr.rel (%p342) target = $region48
        $region47: #{tpu_custom_call.1} parent=31 // pred_region
          %s345 = smul.u32 2, %s25
          %s347 = ssub.s32 256, 256
          %348 = vsyncadd %s338, %s347
          %s349 = smul.addr %s26, 2
          %s350 = sadd.s32 %s345, %s349
          %s351 = smul.addr %s350, 128
          %s352 = scalar_lea.hbm %s3, %s351
          %s353 = sshll.u32 %s341, 4
          %s354 = int_to_ptr.vmem [resolvable:$true] %s353
          %359 = dma.vmem_to_hbm [thread:$0]  %s354, 256, %s352, %s338, 128, 128, 8
        $region48: #{tpu_custom_call.1} parent=31 // pred_fallthru
          _
      $region32: #{tpu_custom_call.1} parent=5 // pred_fallthru
        _
      %p360 = scmp.le.s32.totalorder 2, %s16
      // Predicated region
      $region49: #{tpu_custom_call.1} parent=5 // pred_check
        %p361 = pneg %p360
      $region50: #{tpu_custom_call.1} parent=5 // pred_check_branch
        %363 = sbr.rel (%p361) target = $region52
      $region51: #{tpu_custom_call.1} parent=5 // pred_region
        %s364 = ssub.s32 %s16, 2
        // Predicated region
        $region53: #{tpu_custom_call.1} parent=51 // pred_check
          %p365 = pneg %p134
        $region54: #{tpu_custom_call.1} parent=51 // pred_check_branch
          %367 = sbr.rel (%p365) target = $region56
        $region55: #{tpu_custom_call.1} parent=51 // pred_region
          %s368 = sand.u32 %s119, 1
          %s369 = scalar_lea.sflag [#allocation4], %s368
          %s370 = sand.u32 %s119, 1
          %s371 = smul.addr %s370, 16
          %s372 = scalar_lea.vmem [#allocation8], %s371
          %373 = dma.done %s369, 256
        $region56: #{tpu_custom_call.1} parent=51 // pred_fallthru
          _
      $region52: #{tpu_custom_call.1} parent=5 // pred_fallthru
        _
    $region6: #{tpu_custom_call.1} parent=1 // loop_footer
      %s20 = sadd.s32 1, %s16
    $region7: #{tpu_custom_call.1} parent=1 // loop_footer_branch
      %15 = sbr.rel target = $region3
    $region8: #{tpu_custom_call.1} parent=1 // loop_exit
      _
    %374 = vsyncpa [#allocation3], 1
    %s375 = scalar_lea.sflag [#allocation3], 1
    %376 = vsyncpa %s375, 1
    %377 = vsyncpa [#allocation6], 1
    %378 = vsyncpa [#allocation4], 1
    %s379 = scalar_lea.sflag [#allocation4], 1
    %380 = vsyncpa %s379, 1

</llo_original>
